<compile_context>
chip_gen: v7x
topology: tpu7x:2x2x1
jax: 0.10.0
libtpu: 0.0.40
codegen_flags: <defaults>
</compile_context>

<pallas_src>
import functools

import jax
import jax.numpy as jnp
from jax.experimental import pallas as pl
from jax.experimental.pallas import tpu as pltpu


# ---------------------------------------------------------------------------
# Pallas global-average-pool kernel (rows = N*C on sublanes, H*W on lanes)
# ---------------------------------------------------------------------------

def _make_gap_kernel(inv_hw, hw, tk, use_scratch):
    mask_tail = (hw % tk) != 0

    def kernel(x_ref, o_ref, *scratch):
        acc_ref = scratch[0] if use_scratch else o_ref
        k = pl.program_id(1)

        @pl.when(k == 0)
        def _():
            acc_ref[...] = jnp.zeros_like(acc_ref)

        x = x_ref[...]
        if mask_tail:
            # Last k-block covers fewer than TK valid lanes; zero out-of-range
            # lanes so padded data never contaminates the sum (VPU cmp+select).
            lane = jax.lax.broadcasted_iota(jnp.int32, x.shape, 1)
            x = jnp.where(lane < (hw - k * tk), x, jnp.zeros_like(x))

        # f32 accumulation over the lane axis without materializing an f32 copy
        # of the full tile in VMEM; Mosaic lowers this as VPU vreg adds plus one
        # cross-lane (XLU) reduce per output row group.
        acc_ref[...] += jnp.sum(x, axis=-1, keepdims=True, dtype=jnp.float32)

        @pl.when(k == pl.num_programs(1) - 1)
        def _():
            if use_scratch:
                o_ref[...] = (acc_ref[...] * inv_hw).astype(o_ref.dtype)
            else:
                o_ref[...] = o_ref[...] * inv_hw

    return kernel


def _vmem_capacity_bytes():
    try:
        return int(pltpu.get_tpu_info().vmem_capacity_bytes)
    except Exception:
        return 64 * 1024 * 1024  # conservative fallback (v7x per-core VMEM)


def _choose_tiles(rows, hw, itemsize, vmem_cap,
                  target_tile_bytes=None, cap_tile_bytes=None):
    """Pick (TB, TK) tiles for the (rows, H*W) layout.

    Constraints:
      * input block (TB, TK): TK % 128 == 0 or TK == HW;
      * output block (TB, 1): TB % 8 == 0 or TB == rows;
      * double-buffered input tile stays well inside scoped VMEM.
    """
    row_align = max(8, 32 // itemsize)        # f32: 8, bf16: 16, int8/fp8: 32
    if cap_tile_bytes is None:
        # Leave >= half of physical VMEM for XLA / output buffers / headroom;
        # the input tile is double-buffered by the pipeline.
        cap_tile_bytes = max(1 << 20, min(12 << 20, (vmem_cap // 2 - (4 << 20)) // 2))
    if target_tile_bytes is None:
        target_tile_bytes = min(8 << 20, cap_tile_bytes)

    # Reduction tile TK (lane axis): full HW if it fits, else a 128-multiple
    # under the cap (tail lanes are masked in-kernel).
    if hw * row_align * itemsize <= cap_tile_bytes or hw < 128:
        tk = hw
    else:
        tk_cap = (cap_tile_bytes // (row_align * itemsize)) // 128 * 128
        tk = max(128, min(hw - (hw % 128), tk_cap))

    # Row tile TB (sublane axis): grow until ~target bytes per DMA step.
    tb = max(row_align,
             (target_tile_bytes // (tk * itemsize)) // row_align * row_align)
    if tb >= rows:
        tb = rows
    if rows > row_align:
        # Keep >= 2 blocks on the parallel axis so v7x megacore can split it.
        half = -(-rows // 2)
        half = -(-half // row_align) * row_align
        tb = min(tb, half)
    return int(tb), int(tk)


def _global_avg_pool_pallas(x, target_tile_bytes=None, cap_tile_bytes=None):
    """adaptive_avg_pool2d(x, (1,1)).view(N, -1) via a tiled Pallas reduction."""
    n, c, h, w = x.shape
    rows, hw = n * c, h * w
    x2 = x.reshape(rows, hw)                  # free reshape of NCHW, no transpose
    itemsize = jnp.dtype(x.dtype).itemsize
    vmem_cap = _vmem_capacity_bytes()
    tb, tk = _choose_tiles(rows, hw, itemsize, vmem_cap,
                           target_tile_bytes, cap_tile_bytes)

    use_scratch = x.dtype != jnp.float32
    in_tile = tb * tk * itemsize
    out_tile = tb * itemsize
    acc_bytes = tb * 4 if use_scratch else 0
    vmem_limit = 2 * in_tile + 2 * out_tile + acc_bytes + (2 << 20)
    vmem_limit = int(min(max(vmem_limit, 4 << 20), vmem_cap))

    kernel = _make_gap_kernel(1.0 / float(hw), hw, tk, use_scratch)
    scratch = [pltpu.VMEM((tb, 1), jnp.float32)] if use_scratch else []

    out = pl.pallas_call(
        kernel,
        out_shape=jax.ShapeDtypeStruct((rows, 1), x.dtype),
        grid=(pl.cdiv(rows, tb), pl.cdiv(hw, tk)),       # reduction axis last
        in_specs=[pl.BlockSpec((tb, tk), lambda i, k: (i, k))],
        out_specs=pl.BlockSpec((tb, 1), lambda i, k: (i, 0)),  # resident over k
        scratch_shapes=scratch,
        compiler_params=pltpu.CompilerParams(
            dimension_semantics=("parallel", "arbitrary"),
            vmem_limit_bytes=vmem_limit,
        ),
        cost_estimate=pl.CostEstimate(
            flops=rows * hw,
            transcendentals=0,
            bytes_accessed=rows * hw * itemsize + rows * itemsize,
        ),
    )(x2)
    return out.reshape(n, c)


_PALLAS_MIN_BYTES = 1 << 20  # below ~1 MiB a fused XLA reduction beats launch overhead


def global_avg_pool(x, force_pallas=False,
                    target_tile_bytes=None, cap_tile_bytes=None):
    """adaptive_avg_pool2d(x, (1, 1)).view(N, -1) for NCHW input x."""
    n, c, h, w = x.shape
    nbytes = n * c * h * w * jnp.dtype(x.dtype).itemsize
    if not force_pallas and nbytes < _PALLAS_MIN_BYTES:
        return jnp.mean(x, axis=(2, 3), dtype=jnp.float32).astype(x.dtype)
    return _global_avg_pool_pallas(x, target_tile_bytes, cap_tile_bytes)


# ---------------------------------------------------------------------------
# GradientReversal module: pool -> flatten -> GRL (identity fwd, -grad bwd)
# ---------------------------------------------------------------------------

@functools.partial(jax.custom_vjp, nondiff_argnums=(1, 2))
def _pool_grl(x, h, w):
    return global_avg_pool(x)


def _pool_grl_fwd(x, h, w):
    return global_avg_pool(x), None


def _pool_grl_bwd(h, w, _res, g):
    # GRL flips the sign (hard-coded -1, matching GradientReversalFunction);
    # the average pool spreads g/(H*W) uniformly over the spatial window.
    dx = (-(g.astype(jnp.float32)) * (1.0 / float(h * w)))[:, :, None, None]
    dx = jnp.broadcast_to(dx, (g.shape[0], g.shape[1], h, w)).astype(g.dtype)
    return (dx,)


_pool_grl.defvjp(_pool_grl_fwd, _pool_grl_bwd)


def gradient_reversal_module(x):
    """GradientReversal.forward: global avg pool -> flatten -> GRL identity."""
    n, c, h, w = x.shape
    return _pool_grl(x, h, w)


# ---------------------------------------------------------------------------
# Self-test
# ---------------------------------------------------------------------------

if __name__ == "__main__":
    key = jax.random.PRNGKey(0)

    # 1) Small spec shape: exercise the Pallas kernel directly (bypass fallback).
    x = jax.random.normal(key, (2, 4, 16, 16), dtype=jnp.float32)
    out_pallas = jax.block_until_ready(global_avg_pool(x, force_pallas=True))
    ref = jnp.mean(x, axis=(2, 3))
    assert out_pallas.shape == (2, 4)
    assert jnp.allclose(out_pallas, ref, atol=1e-5, rtol=1e-5)

    # 2) Full module forward (GRL identity on top of pooled features).
    out_mod = jax.block_until_ready(gradient_reversal_module(x))
    assert jnp.allclose(out_mod, ref, atol=1e-5, rtol=1e-5)

    # 3) Backward: gradient reversal => d/dx sum(module(x)) == -1/(H*W) everywhere.
    g = jax.block_until_ready(
        jax.grad(lambda v: jnp.sum(gradient_reversal_module(v)))(x))
    assert jnp.allclose(g, -jnp.ones_like(x) / (16 * 16), atol=1e-6, rtol=1e-6)

    # 4) Larger activation: Pallas path automatically, multi-block parallel axis.
    xb = jax.random.normal(jax.random.PRNGKey(1), (8, 64, 64, 64), dtype=jnp.float32)
    out_big = jax.block_until_ready(gradient_reversal_module(xb))
    ref_big = jnp.mean(xb, axis=(2, 3))
    assert out_big.shape == (8, 64)
    assert jnp.allclose(out_big, ref_big, atol=1e-5, rtol=1e-5)

    # 5) Rows (N*C) not a multiple of the row tile: padded last row block.
    xr = jax.random.normal(jax.random.PRNGKey(2), (2, 6, 16, 16), dtype=jnp.float32)
    out_r = jax.block_until_ready(global_avg_pool(xr, force_pallas=True))
    assert jnp.allclose(out_r, jnp.mean(xr, axis=(2, 3)), atol=1e-5, rtol=1e-5)

    # 6) H*W not a 128-multiple with a tiny tile cap: multi-step reduction grid
    #    with in-kernel tail-lane masking (the v7x VMEM-hazard path).
    xm = jax.random.normal(jax.random.PRNGKey(3), (2, 8, 56, 56), dtype=jnp.float32)
    out_m = jax.block_until_ready(
        global_avg_pool(xm, force_pallas=True,
                        target_tile_bytes=8192, cap_tile_bytes=8192))
    assert jnp.allclose(out_m, jnp.mean(xm, axis=(2, 3)), atol=1e-5, rtol=1e-5)

    # 7) bf16 input: f32 scratch accumulator path with final cast.
    xh = jax.random.normal(jax.random.PRNGKey(4), (2, 4, 16, 16), dtype=jnp.bfloat16)
    out_h = jax.block_until_ready(global_avg_pool(xh, force_pallas=True))
    ref_h = jnp.mean(xh.astype(jnp.float32), axis=(2, 3))
    assert jnp.allclose(out_h.astype(jnp.float32), ref_h, atol=1e-2, rtol=1e-2)

    print("KERNEL_OK")
</pallas_src>

<mosaic_0001>
module attributes {stable_mosaic.version = 11 : i64} {
  func.func @kernel(%arg0: i32, %arg1: i32, %arg2: memref<8x256xf32, #tpu.memory_space<vmem>>, %arg3: memref<8x1xf32, #tpu.memory_space<vmem>>) attributes {dimension_semantics = [#tpu.dimension_semantics<parallel>, #tpu.dimension_semantics<arbitrary>], iteration_bounds = array<i64: 1, 1>, scalar_prefetch = 0 : i64, scratch_operands = 0 : i64, tpu.core_type = #tpu.core_type<tc>, window_params = [{transform_indices = @transform_0, window_bounds = array<i64: 8, 256>}, {transform_indices = @transform_1, window_bounds = array<i64: 8, 1>}]} {
    %c0_i32 = arith.constant 0 : i32
    %0 = arith.cmpi eq, %arg1, %c0_i32 : i32
    %1 = arith.extui %0 : i1 to i32
    %c0_i32_0 = arith.constant 0 : i32
    %2 = arith.cmpi ne, %1, %c0_i32_0 : i32
    scf.if %2 {
      %cst_8 = arith.constant 0.000000e+00 : f32
      %12 = vector.broadcast %cst_8 : f32 to vector<8x1xf32>
      %c0_9 = arith.constant 0 : index
      %c0_10 = arith.constant 0 : index
      %13 = vector.load %arg3[%c0_9, %c0_10] : memref<8x1xf32, #tpu.memory_space<vmem>>, vector<8x1xf32>
      tpu.vector_store %arg3[%c0_9, %c0_10], %12 {strides = array<i32>} : memref<8x1xf32, #tpu.memory_space<vmem>>, vector<8x1xf32>,
    } else {
    }
    %c0 = arith.constant 0 : index
    %c0_1 = arith.constant 0 : index
    %3 = vector.load %arg2[%c0, %c0_1] : memref<8x256xf32, #tpu.memory_space<vmem>>, vector<8x256xf32>
    %c0_2 = arith.constant 0 : index
    %c0_3 = arith.constant 0 : index
    %4 = vector.load %arg3[%c0_2, %c0_3] : memref<8x1xf32, #tpu.memory_space<vmem>>, vector<8x1xf32>
    %cst = arith.constant dense<0.000000e+00> : vector<8xf32>
    %5 = vector.multi_reduction <add>, %3, %cst [1] : vector<8x256xf32> to vector<8xf32>
    %6 = vector.shape_cast %5 : vector<8xf32> to vector<8x1xf32>
    %7 = arith.addf %4, %6 : vector<8x1xf32>
    %c0_4 = arith.constant 0 : index
    %c0_5 = arith.constant 0 : index
    %8 = vector.load %arg3[%c0_4, %c0_5] : memref<8x1xf32, #tpu.memory_space<vmem>>, vector<8x1xf32>
    tpu.vector_store %arg3[%c0_4, %c0_5], %7 {strides = array<i32>} : memref<8x1xf32, #tpu.memory_space<vmem>>, vector<8x1xf32>,
    %c0_i32_6 = arith.constant 0 : i32
    %9 = arith.cmpi eq, %arg1, %c0_i32_6 : i32
    %10 = arith.extui %9 : i1 to i32
    %c0_i32_7 = arith.constant 0 : i32
    %11 = arith.cmpi ne, %10, %c0_i32_7 : i32
    scf.if %11 {
      %c0_8 = arith.constant 0 : index
      %c0_9 = arith.constant 0 : index
      %12 = vector.load %arg3[%c0_8, %c0_9] : memref<8x1xf32, #tpu.memory_space<vmem>>, vector<8x1xf32>
      %cst_10 = arith.constant 3.906250e-03 : f32
      %13 = vector.broadcast %cst_10 : f32 to vector<8x1xf32>
      %14 = arith.mulf %12, %13 : vector<8x1xf32>
      %c0_11 = arith.constant 0 : index
      %c0_12 = arith.constant 0 : index
      %15 = vector.load %arg3[%c0_11, %c0_12] : memref<8x1xf32, #tpu.memory_space<vmem>>, vector<8x1xf32>
      tpu.vector_store %arg3[%c0_11, %c0_12], %14 {strides = array<i32>} : memref<8x1xf32, #tpu.memory_space<vmem>>, vector<8x1xf32>,
    } else {
    }
    return
  }
  func.func @transform_0(%arg0: i32, %arg1: i32) -> (i32, i32) {
    %c0_i32 = arith.constant 0 : i32
    return %arg0, %arg1 : i32, i32
  }
  func.func @transform_1(%arg0: i32, %arg1: i32) -> (i32, i32) {
    %c0_i32 = arith.constant 0 : i32
    %c0_i32_0 = arith.constant 0 : i32
    return %arg0, %c0_i32 : i32, i32
  }
}

</mosaic_0001>

<llo_original>
// kernel: tpu_custom_call.1
$region0: #{tpu_custom_call.1}
  #allocation0 [shape = 'u32[]', space=smem, size = 0x4, offset = 0x4, fixed_abs, tag = 'smem constant byte address 0x4 - core index']
  #allocation1 [shape = 'u32[144,128]{1,0:T(1,128)}', space=vmem, size = 0x12000, scoped, tag = 'internal scratch']
  %s0 = inlined_call_operand.hbm [shape: f32[8,256], index: 0, kind: input, shape index: {}]
  %s1 = inlined_call_operand.vmem [shape: f32[8,1], index: 1, kind: output, shape index: {}]
  %s2 = sld [smem:[#allocation0]]
  $region26: #{tpu_custom_call.1} parent=0
    _
  %s4 = ssub.s32 1, %s2
  %s5 = scalar_select 0, %s4, %s2
  $region1: #{tpu_custom_call.1} parent=0
    #allocation2 [shape = 'u8[8192]{0}', space=vmem, size = 0x2000, scoped, tag = 'input window, operand 0, single buffered']
    #allocation3 [shape = 's32[1]{0}', space=sflag, size = 0x4, scoped, tag = 'scoped memory for tpu_custom_call.1']
    %6 = vsyncpa [#allocation3], 0
    // Predicated region
    $region2: #{tpu_custom_call.1} parent=1 // pred_check
      _
    $region3: #{tpu_custom_call.1} parent=1 // pred_check_branch
      %8 = sbr.rel (0) target = $region5
    $region4: #{tpu_custom_call.1} parent=1 // pred_region
      %s10 = ssub.s32 256, 256
      %11 = vsyncadd [#allocation3], %s10
      %s13 = sshll.u32 [#allocation2], 4
      %s14 = int_to_ptr.vmem [resolvable:$true] %s13
      %16 = dma.hbm_to_vmem [thread:$0]  %s0, 256, %s14, [#allocation3]
    $region5: #{tpu_custom_call.1} parent=1 // pred_fallthru
      _
    // Predicated region
    $region6: #{tpu_custom_call.1} parent=1 // pred_check
      _
    $region7: #{tpu_custom_call.1} parent=1 // pred_check_branch
      %18 = sbr.rel (0) target = $region9
    $region8: #{tpu_custom_call.1} parent=1 // pred_region
      %19 = dma.done [#allocation3], 256
    $region9: #{tpu_custom_call.1} parent=1 // pred_fallthru
      _
    %p20 = scmp.eq.s32.totalorder 0, 0
    // Predicated region
    $region10: #{tpu_custom_call.1} parent=1 // pred_check
      %p21 = pneg %p20
    $region11: #{tpu_custom_call.1} parent=1 // pred_check_branch
      %23 = sbr.rel (%p21) target = $region13
    $region12: #{tpu_custom_call.1} parent=1 // pred_region
      %vm24 = vcmask 7168
      %25 = vst.msk [vmem:[%s1] sm:$0xff] %vm24, 0.0
    $region13: #{tpu_custom_call.1} parent=1 // pred_fallthru
      _
    %v26 = vld [vmem:[#allocation2] sm:$0xff]
    %v27 = vld [vmem:[#allocation2 + $0x8] sm:$0xff]
    %v28 = vld [vmem:[%s1] sm:$0xff]
    %v29 = vadd.f32 %v26, %v27
    %30 = vadd.xlane.f32.xlu0 %v29
    %v31 = vpop.xlane.xlu0 %30
    %v32 = vadd.f32 %v28, %v31
    %vm33 = vcmask 7168
    %34 = vst.msk [vmem:[%s1] sm:$0xff] %vm33, %v32
    // Predicated region
    $region14: #{tpu_custom_call.1} parent=1 // pred_check
      %p35 = pneg %p20
    $region15: #{tpu_custom_call.1} parent=1 // pred_check_branch
      %37 = sbr.rel (%p35) target = $region17
    $region16: #{tpu_custom_call.1} parent=1 // pred_region
      %v38 = vld [vmem:[%s1] sm:$0xff]
      %v39 = vmul.f32 %v38, 0.00390625
      %40 = vst.msk [vmem:[%s1] sm:$0xff] %vm33, %v39
    $region17: #{tpu_custom_call.1} parent=1 // pred_fallthru
      _
    // Predicated region
    $region18: #{tpu_custom_call.1} parent=1 // pred_check
      _
    $region19: #{tpu_custom_call.1} parent=1 // pred_check_branch
      %42 = sbr.rel (0) target = $region21
    $region20: #{tpu_custom_call.1} parent=1 // pred_region
      _
    $region21: #{tpu_custom_call.1} parent=1 // pred_fallthru
      _
    // Predicated region
    $region22: #{tpu_custom_call.1} parent=1 // pred_check
      _
    $region23: #{tpu_custom_call.1} parent=1 // pred_check_branch
      %44 = sbr.rel (0) target = $region25
    $region24: #{tpu_custom_call.1} parent=1 // pred_region
      _
    $region25: #{tpu_custom_call.1} parent=1 // pred_fallthru
      _
    %45 = vsyncpa [#allocation3], 1

</llo_original>
